<compile_context>
chip_gen: v7x
topology: tpu7x:2x2x1
jax: 0.10.0
libtpu: 0.0.40
codegen_flags: <defaults>
</compile_context>

<pallas_src>
import jax
import jax.numpy as jnp
import numpy as np
from jax import lax
from jax.experimental import pallas as pl
from jax.experimental.pallas import tpu as pltpu


# ----------------------------- Pallas kernels -----------------------------

def _make_fused_conv_kernel(branch_taps, row_tile, W, Cin, Cout, halo_rows):
    """Fused [c0 | dilated 3x3 branches | image-pool broadcast] kernel factory."""
    TM = row_tile * W
    nb = len(branch_taps)

    def kernel(xp_hbm, w_ref, b_ref, pool_ref, o_ref, halo_ref):
        n = pl.program_id(0)
        i = pl.program_id(1)
        # One contiguous HBM->VMEM DMA: TH rows + 2R halo of padded image `n`.
        # TODO(synk): copy is synchronous; a 2-slot manual double buffer would overlap
        # it with the previous row tile's compute.
        pltpu.sync_copy(xp_hbm.at[n, pl.ds(i * row_tile, halo_rows)], halo_ref)

        for b, taps in enumerate(branch_taps):
            acc = jnp.zeros((TM, Cout), jnp.float32)
            for t, dy, dx in taps:                      # static unroll; taps read from VMEM
                tap = halo_ref[dy:dy + row_tile, dx:dx + W, :].reshape(TM, Cin)
                acc = acc + jnp.dot(tap, w_ref[t],
                                    preferred_element_type=jnp.float32)
            y = jnp.maximum(acc + b_ref[:, b * Cout:(b + 1) * Cout], 0.0)
            o_ref[0, :, b * Cout:(b + 1) * Cout] = y.astype(o_ref.dtype)

        # image-level feature: bilinear upsample of a 1x1 map == broadcast.
        o_ref[0, :, nb * Cout:(nb + 1) * Cout] = jnp.broadcast_to(
            pool_ref[0], (TM, Cout)).astype(o_ref.dtype)

    return kernel


def _make_image_pool_kernel(inv_hw):
    """Tiled global-average-pool + 1x1 conv + folded-BN + ReLU."""

    def kernel(x_ref, w_ref, b_ref, o_ref, sum_ref):
        j = pl.program_id(1)

        @pl.when(j == 0)
        def _init():
            sum_ref[...] = jnp.zeros_like(sum_ref)

        sum_ref[...] += jnp.sum(x_ref[0].astype(jnp.float32), axis=0, keepdims=True)

        @pl.when(j == pl.num_programs(1) - 1)
        def _finalize():
            mean = sum_ref[...] * inv_hw                                    # (1, Cin) f32
            y = jnp.dot(mean, w_ref[...], preferred_element_type=jnp.float32)
            o_ref[0] = jnp.maximum(y + b_ref[...], 0.0)

    return kernel


# ----------------------------- pallas_call wrappers -----------------------------

def _choose_row_tile(H, W, target_rows):
    # Largest divisor of H <= target_rows whose flattened tile (TH*W) stays 8-aligned.
    for d in range(min(H, max(1, target_rows)), 0, -1):
        if H % d == 0 and (d * W) % 8 == 0:
            return d
    return H


def _choose_pool_tile(HW, target):
    for d in range(min(HW, max(1, target)), 0, -1):
        if HW % d == 0 and d % 8 == 0:
            return d
    return HW


def _branch_taps(rates, R):
    """Per conv branch: list of (weight tap index, dy, dx) offsets into the halo slab."""
    taps = [[(0, R, R)]]                         # c0: 1x1 conv -> centre tap
    t = 1
    for r in rates:
        lst = []
        for ky in range(3):
            for kx in range(3):
                lst.append((t, R + (ky - 1) * r, R + (kx - 1) * r))
                t += 1
        taps.append(lst)
    return taps


def _fused_conv(xp, w_all, b_conv, pool_y, *, H, W, Cin, Cout, R, rates, row_tile):
    N = xp.shape[0]
    Wp = W + 2 * R
    T = w_all.shape[0]
    nb_conv = 1 + len(rates)
    Ctot = (nb_conv + 1) * Cout
    TH = row_tile
    TM = TH * W
    halo_rows = TH + 2 * R
    kernel = _make_fused_conv_kernel(_branch_taps(rates, R), TH, W, Cin, Cout, halo_rows)

    return pl.pallas_call(
        kernel,
        out_shape=jax.ShapeDtypeStruct((N, H * W, Ctot), jnp.float32),
        grid_spec=pltpu.PrefetchScalarGridSpec(
            num_scalar_prefetch=0,
            grid=(N, H // TH),
            in_specs=[
                pl.BlockSpec(memory_space=pl.ANY),                       # padded x (HBM)
                pl.BlockSpec((T, Cin, Cout), lambda n, i: (0, 0, 0)),    # folded tap weights
                pl.BlockSpec((1, nb_conv * Cout), lambda n, i: (0, 0)),  # folded biases
                pl.BlockSpec((1, 1, Cout), lambda n, i: (n, 0, 0)),      # pooled branch
            ],
            out_specs=pl.BlockSpec((1, TM, Ctot), lambda n, i: (n, i, 0)),
            scratch_shapes=[pltpu.VMEM((halo_rows, Wp, Cin), jnp.bfloat16)],
        ),
        # NOTE: raise vmem_limit_bytes here when TH / Cin are scaled up (esp. v6e).
        compiler_params=pltpu.CompilerParams(
            dimension_semantics=("parallel", "parallel")),
    )(xp, w_all, b_conv, pool_y)


def _image_pool(x_flat, w_pool, b_pool, pool_tile):
    N, HW, Cin = x_flat.shape
    Cout = w_pool.shape[-1]
    TP = _choose_pool_tile(HW, pool_tile)
    kernel = _make_image_pool_kernel(1.0 / float(HW))
    return pl.pallas_call(
        kernel,
        out_shape=jax.ShapeDtypeStruct((N, 1, Cout), jnp.float32),
        grid_spec=pltpu.PrefetchScalarGridSpec(
            num_scalar_prefetch=0,
            grid=(N, HW // TP),
            in_specs=[
                pl.BlockSpec((1, TP, Cin), lambda n, j: (n, j, 0)),
                pl.BlockSpec((Cin, Cout), lambda n, j: (0, 0)),
                pl.BlockSpec((1, Cout), lambda n, j: (0, 0)),
            ],
            out_specs=pl.BlockSpec((1, 1, Cout), lambda n, j: (n, 0, 0)),
            scratch_shapes=[pltpu.VMEM((1, Cin), jnp.float32)],
        ),
        compiler_params=pltpu.CompilerParams(
            dimension_semantics=("parallel", "arbitrary")),
    )(x_flat, w_pool, b_pool)


# ----------------------------- parameters / folding -----------------------------

def _fold_bn(gamma, beta, mean, var, eps=1e-5):
    # TODO(synk): BatchNorm folded with running stats (eval mode); torch .train()
    # batch-statistic semantics are not replicated here.
    scale = gamma / jnp.sqrt(var + eps)
    bias = beta - mean * scale
    return scale, bias


def _make_branch_params(key, in_ch, out_ch, ksize):
    k1, k2, k3, k4, k5 = jax.random.split(key, 5)
    return dict(
        w=0.1 * jax.random.normal(k1, (out_ch, in_ch, ksize, ksize), jnp.float32),
        gamma=1.0 + 0.1 * jax.random.normal(k2, (out_ch,), jnp.float32),
        beta=0.1 * jax.random.normal(k3, (out_ch,), jnp.float32),
        mean=0.1 * jax.random.normal(k4, (out_ch,), jnp.float32),
        var=0.5 + 0.5 * jax.random.uniform(k5, (out_ch,), jnp.float32),
    )


def init_aspp_params(key, in_ch, out_ch, rates):
    keys = jax.random.split(key, len(rates) + 2)
    params = {"c0": _make_branch_params(keys[0], in_ch, out_ch, 1)}
    for i, _ in enumerate(rates):
        params[f"c{i+1}"] = _make_branch_params(keys[i + 1], in_ch, out_ch, 3)
    params["imagepool"] = _make_branch_params(keys[-1], in_ch, out_ch, 1)
    return params


def _prepare_params(params, rates):
    """Fold BN scale into the conv weights (eval mode), pack per-tap (Cin, Cout)
    matrices for all conv branches into one bf16 tensor, keep biases in f32."""
    taps, biases = [], []
    for b in range(1 + len(rates)):
        p = params["c0"] if b == 0 else params[f"c{b}"]
        scale, bias = _fold_bn(p["gamma"], p["beta"], p["mean"], p["var"])
        w = p["w"] * scale[:, None, None, None]                  # (Cout, Cin, kh, kw)
        kh = w.shape[-1]
        for ky in range(kh):
            for kx in range(kh):
                taps.append(jnp.transpose(w[:, :, ky, kx], (1, 0)))   # (Cin, Cout)
        biases.append(bias)
    w_all = jnp.stack(taps, 0).astype(jnp.bfloat16)              # (T, Cin, Cout)
    b_conv = jnp.concatenate(biases, 0).reshape(1, -1).astype(jnp.float32)

    p = params["imagepool"]
    scale, bias = _fold_bn(p["gamma"], p["beta"], p["mean"], p["var"])
    w_pool = jnp.transpose(p["w"][:, :, 0, 0] * scale[:, None], (1, 0)).astype(jnp.float32)
    b_pool = bias.reshape(1, -1).astype(jnp.float32)
    return dict(w_all=w_all, b_conv=b_conv, w_pool=w_pool, b_pool=b_pool)


def aspp_forward(x_nchw, params, rates, row_tile=None, pool_tile=1024):
    """Equivalent of _ASPP.forward: cat([c0(x), c1(x), ..., imagepool(x)], dim=1)."""
    N, Cin, H, W = x_nchw.shape
    Cout = params["c0"]["w"].shape[0]
    nb_conv = 1 + len(rates)
    Ctot = (nb_conv + 1) * Cout
    prep = _prepare_params(params, rates)

    # Single layout change + bf16 cast + pad; everything downstream is channel-last.
    x_nhwc = jnp.transpose(x_nchw, (0, 2, 3, 1)).astype(jnp.bfloat16)
    R = max(rates) if rates else 0
    xp = jnp.pad(x_nhwc, ((0, 0), (R, R), (R, R), (0, 0)))

    # Image-level branch first (its (N,1,Cout) result feeds the fused conv kernel).
    pool_y = _image_pool(x_nhwc.reshape(N, H * W, Cin), prep["w_pool"],
                         prep["b_pool"], pool_tile)

    if row_tile is None:
        row_tile = max(1, 512 // max(W, 1))
    TH = _choose_row_tile(H, W, row_tile)

    y = _fused_conv(xp, prep["w_all"], prep["b_conv"], pool_y,
                    H=H, W=W, Cin=Cin, Cout=Cout, R=R, rates=rates, row_tile=TH)
    # One transpose back to the torch NCHW layout at the very end.
    return jnp.transpose(y.reshape(N, H, W, Ctot), (0, 3, 1, 2))


# ----------------------------- pure-XLA reference -----------------------------

def ref_aspp(x_nchw, params, rates):
    """Reference path using the SAME preprocessing (BN folding + bf16 casts), so the
    comparison isolates the Pallas kernel math."""
    N, Cin, H, W = x_nchw.shape
    Cout = params["c0"]["w"].shape[0]
    prep = _prepare_params(params, rates)
    xf = jnp.transpose(x_nchw, (0, 2, 3, 1)).astype(jnp.bfloat16).astype(jnp.float32)
    w_all = prep["w_all"].astype(jnp.float32)

    outs = []
    for b in range(1 + len(rates)):
        if b == 0:
            w_hwio = w_all[0].reshape(1, 1, Cin, Cout)
            pad, dil = 0, 1
        else:
            w_hwio = w_all[1 + 9 * (b - 1):1 + 9 * b].reshape(3, 3, Cin, Cout)
            pad = dil = rates[b - 1]
        y = lax.conv_general_dilated(
            xf, w_hwio, window_strides=(1, 1), padding=[(pad, pad), (pad, pad)],
            rhs_dilation=(dil, dil), dimension_numbers=("NHWC", "HWIO", "NHWC"),
            precision=lax.Precision.HIGHEST)
        outs.append(jnp.maximum(y + prep["b_conv"][0, b * Cout:(b + 1) * Cout], 0.0))

    m = jnp.mean(xf, axis=(1, 2))                                         # (N, Cin)
    yp = jnp.maximum(jnp.dot(m, prep["w_pool"], precision=lax.Precision.HIGHEST)
                     + prep["b_pool"], 0.0)
    outs.append(jnp.broadcast_to(yp[:, None, None, :], (N, H, W, Cout)))

    return jnp.transpose(jnp.concatenate(outs, axis=-1), (0, 3, 1, 2))


# ----------------------------- main -----------------------------

if __name__ == "__main__":
    in_ch, out_ch = 4, 8
    rates = (2, 4, 6)
    N, H, W = 2, 16, 16

    key = jax.random.PRNGKey(0)
    kx, kp = jax.random.split(key)
    x = jax.random.normal(kx, (N, in_ch, H, W), jnp.float32)
    params = init_aspp_params(kp, in_ch, out_ch, rates)

    # row_tile=8 / pool_tile=128 exercise multi-tile halo DMAs and the tiled reduction.
    out = aspp_forward(x, params, rates, row_tile=8, pool_tile=128)
    out = jax.block_until_ready(out)

    assert out.shape == (N, out_ch * (len(rates) + 2), H, W), out.shape
    expected = ref_aspp(x, params, rates)
    np.testing.assert_allclose(np.asarray(out), np.asarray(expected),
                               rtol=1e-3, atol=1e-3)

    print("KERNEL_OK")
</pallas_src>

<mosaic_0001>
module attributes {stable_mosaic.version = 11 : i64} {
  func.func @kernel(%arg0: i32, %arg1: i32, %arg2: memref<1x128x4xbf16, #tpu.memory_space<vmem>>, %arg3: memref<4x8xf32, #tpu.memory_space<vmem>>, %arg4: memref<1x8xf32, #tpu.memory_space<vmem>>, %arg5: memref<1x1x8xf32, #tpu.memory_space<vmem>>, %arg6: memref<1x4xf32, #tpu.memory_space<vmem>>) attributes {dimension_semantics = [#tpu.dimension_semantics<parallel>, #tpu.dimension_semantics<arbitrary>], iteration_bounds = array<i64: 2, 2>, scalar_prefetch = 0 : i64, scratch_operands = 1 : i64, tpu.core_type = #tpu.core_type<tc>, window_params = [{transform_indices = @transform_0, window_bounds = array<i64: 1, 128, 4>}, {pipeline_mode = #tpu.pipeline_mode<synchronous>, transform_indices = @transform_1, window_bounds = array<i64: 4, 8>}, {pipeline_mode = #tpu.pipeline_mode<synchronous>, transform_indices = @transform_2, window_bounds = array<i64: 1, 8>}, {transform_indices = @transform_3, window_bounds = array<i64: 1, 1, 8>}]} {
    %c0_i32 = arith.constant 0 : i32
    %0 = arith.cmpi eq, %arg1, %c0_i32 : i32
    %1 = arith.extui %0 : i1 to i32
    %c0_i32_0 = arith.constant 0 : i32
    %2 = arith.cmpi ne, %1, %c0_i32_0 : i32
    scf.if %2 {
      %cst_8 = arith.constant 0.000000e+00 : f32
      %14 = vector.broadcast %cst_8 : f32 to vector<1x4xf32>
      %c0_9 = arith.constant 0 : index
      %c0_10 = arith.constant 0 : index
      %15 = vector.load %arg6[%c0_9, %c0_10] : memref<1x4xf32, #tpu.memory_space<vmem>>, vector<1x4xf32>
      tpu.vector_store %arg6[%c0_9, %c0_10], %14 {strides = array<i32>} : memref<1x4xf32, #tpu.memory_space<vmem>>, vector<1x4xf32>,
    } else {
    }
    %c0 = arith.constant 0 : index
    %c0_1 = arith.constant 0 : index
    %3 = vector.load %arg6[%c0, %c0_1] : memref<1x4xf32, #tpu.memory_space<vmem>>, vector<1x4xf32>
    %c0_2 = arith.constant 0 : index
    %c0_3 = arith.constant 0 : index
    %c0_4 = arith.constant 0 : index
    %4 = vector.load %arg2[%c0_2, %c0_3, %c0_4] : memref<1x128x4xbf16, #tpu.memory_space<vmem>>, vector<1x128x4xbf16>
    %5 = vector.shape_cast %4 : vector<1x128x4xbf16> to vector<128x4xbf16>
    %6 = arith.extf %5 : vector<128x4xbf16> to vector<128x4xf32>
    %cst = arith.constant dense<0.000000e+00> : vector<4xf32>
    %7 = vector.multi_reduction <add>, %6, %cst [0] : vector<128x4xf32> to vector<4xf32>
    %8 = vector.shape_cast %7 : vector<4xf32> to vector<1x4xf32>
    %9 = arith.addf %3, %8 : vector<1x4xf32>
    %c0_5 = arith.constant 0 : index
    %c0_6 = arith.constant 0 : index
    %10 = vector.load %arg6[%c0_5, %c0_6] : memref<1x4xf32, #tpu.memory_space<vmem>>, vector<1x4xf32>
    tpu.vector_store %arg6[%c0_5, %c0_6], %9 {strides = array<i32>} : memref<1x4xf32, #tpu.memory_space<vmem>>, vector<1x4xf32>,
    %c1_i32 = arith.constant 1 : i32
    %11 = arith.cmpi eq, %arg1, %c1_i32 : i32
    %12 = arith.extui %11 : i1 to i32
    %c0_i32_7 = arith.constant 0 : i32
    %13 = arith.cmpi ne, %12, %c0_i32_7 : i32
    scf.if %13 {
      %c0_8 = arith.constant 0 : index
      %c0_9 = arith.constant 0 : index
      %14 = vector.load %arg6[%c0_8, %c0_9] : memref<1x4xf32, #tpu.memory_space<vmem>>, vector<1x4xf32>
      %cst_10 = arith.constant 3.906250e-03 : f32
      %15 = vector.broadcast %cst_10 : f32 to vector<1x4xf32>
      %16 = arith.mulf %14, %15 : vector<1x4xf32>
      %c0_11 = arith.constant 0 : index
      %c0_12 = arith.constant 0 : index
      %17 = vector.load %arg3[%c0_11, %c0_12] : memref<4x8xf32, #tpu.memory_space<vmem>>, vector<4x8xf32>
      %cst_13 = arith.constant dense<0.000000e+00> : vector<1x8xf32>
      %18 = tpu.matmul %16, %17, %cst_13 {dimension_numbers = #tpu.dot_dimension_numbers<[1], [0], [0], [1], [0, 0, 1, 1], [], []>} : vector<1x4xf32>, vector<4x8xf32>, vector<1x8xf32> -> vector<1x8xf32>
      %c0_14 = arith.constant 0 : index
      %c0_15 = arith.constant 0 : index
      %19 = vector.load %arg4[%c0_14, %c0_15] : memref<1x8xf32, #tpu.memory_space<vmem>>, vector<1x8xf32>
      %20 = arith.addf %18, %19 : vector<1x8xf32>
      %cst_16 = arith.constant 0.000000e+00 : f32
      %21 = vector.broadcast %cst_16 : f32 to vector<1x8xf32>
      %22 = arith.maximumf %20, %21 : vector<1x8xf32>
      %c0_17 = arith.constant 0 : index
      %c0_18 = arith.constant 0 : index
      %c0_19 = arith.constant 0 : index
      %23 = vector.load %arg5[%c0_17, %c0_18, %c0_19] : memref<1x1x8xf32, #tpu.memory_space<vmem>>, vector<1x1x8xf32>
      %24 = vector.shape_cast %23 : vector<1x1x8xf32> to vector<1x8xf32>
      %25 = vector.shape_cast %22 : vector<1x8xf32> to vector<1x1x8xf32>
      tpu.vector_store %arg5[%c0_17, %c0_18, %c0_19], %25 {strides = array<i32>} : memref<1x1x8xf32, #tpu.memory_space<vmem>>, vector<1x1x8xf32>,
    } else {
    }
    return
  }
  func.func @transform_0(%arg0: i32, %arg1: i32) -> (i32, i32, i32) {
    %c0_i32 = arith.constant 0 : i32
    %c0_i32_0 = arith.constant 0 : i32
    return %arg0, %arg1, %c0_i32 : i32, i32, i32
  }
  func.func @transform_1(%arg0: i32, %arg1: i32) -> (i32, i32) {
    %c0_i32 = arith.constant 0 : i32
    %c0_i32_0 = arith.constant 0 : i32
    %c0_i32_1 = arith.constant 0 : i32
    return %c0_i32, %c0_i32_0 : i32, i32
  }
  func.func @transform_2(%arg0: i32, %arg1: i32) -> (i32, i32) {
    %c0_i32 = arith.constant 0 : i32
    %c0_i32_0 = arith.constant 0 : i32
    %c0_i32_1 = arith.constant 0 : i32
    return %c0_i32, %c0_i32_0 : i32, i32
  }
  func.func @transform_3(%arg0: i32, %arg1: i32) -> (i32, i32, i32) {
    %c0_i32 = arith.constant 0 : i32
    %c0_i32_0 = arith.constant 0 : i32
    %c0_i32_1 = arith.constant 0 : i32
    return %arg0, %c0_i32, %c0_i32_0 : i32, i32, i32
  }
}

</mosaic_0001>

<llo_original>
// kernel: tpu_custom_call.1
$region0: #{tpu_custom_call.1}
  #allocation0 [shape = 'u32[]', space=smem, size = 0x4, offset = 0x4, fixed_abs, tag = 'smem constant byte address 0x4 - core index']
  #allocation1 [shape = 'u32[144,128]{1,0:T(1,128)}', space=vmem, size = 0x12000, scoped, tag = 'internal scratch']
  #allocation2 [shape = 'f32[1,4]{1,0:T(1,128)}', space=vmem, size = 0x200, scoped, tag = 'scratch operand']
  %s0 = inlined_call_operand.vmem [shape: bf16[2,256,4], index: 0, kind: input, shape index: {}]
  %s1 = inlined_call_operand.vmem [shape: f32[4,8], index: 1, kind: input, shape index: {}]
  %s2 = inlined_call_operand.vmem [shape: f32[1,8], index: 2, kind: input, shape index: {}]
  %s3 = inlined_call_operand.hbm [shape: f32[2,1,8], index: 3, kind: output, shape index: {}]
  %s4 = sld [smem:[#allocation0]]
  $region53: #{tpu_custom_call.1} parent=0
    _
  %s6 = ssub.s32 1, %s4
  %s7 = scalar_select 0, %s6, %s4
  $region1: #{tpu_custom_call.1} parent=0
    #allocation3 [shape = 'u8[1024]{0}', space=vmem, size = 0x400, scoped, tag = 'output window, operand 0']
    #allocation4 [shape = 's32[2]{0}', space=sflag, size = 0x8, scoped, tag = 'scoped memory for tpu_custom_call.1']
    %8 = vsyncpa [#allocation4], 0
    %s9 = scalar_lea.sflag [#allocation4], 1
    %10 = vsyncpa %s9, 0
    loop: start=0, step=1, limit=6
    $region2: #{tpu_custom_call.1} parent=1 // loop_pre_header
      _
    $region3: #{tpu_custom_call.1} parent=1 // loop_header
      %s12 = sphi 0, %s16
      %p13 = scmp.ge.s32.totalorder %s12, 6
      %s19 = sphi 0, %s31
      %s20 = sphi 0, %s27
      %s21 = sphi 0, %s19
      %s22 = sphi 0, %s20
      %s23 = sphi 0, %s21
      %s24 = sphi 0, %s22
      %s36 = sphi 0, %s38
      %s39 = sphi 0, %s36
      %s40 = sphi 0, %s39
      %s56 = sphi 0, %s40
      %s60 = sphi 0, %s60
      %s62 = sphi 0, %s60
      %s63 = sphi 0, %s62
      %s77 = sphi 0, %s63
      %s81 = sphi 0, %s81
      %s83 = sphi 0, %s81
      %s84 = sphi 0, %s83
      %s98 = sphi 0, %s84
      %s104 = sphi 0, %s106
      %s107 = sphi 0, %s104
      %s108 = sphi 0, %s107
      %s124 = sphi 0, %s108
    $region4: #{tpu_custom_call.1} parent=1 // loop_header_branch
      %15 = sbr.rel (%p13) target = $region8
    $region5: #{tpu_custom_call.1} parent=1 // loop_body
      %s17 = ssub.s32 %s12, 1
      %s18 = ssub.s32 %s12, 2
      %s25 = sadd.s32 1, %s20
      %p26 = scmp.ge.s32.totalorder %s25, 2
      %s27 = scalar_select %p26, 0, %s25
      %s28 = sadd.s32 1, %s19
      %s29 = scalar_select %p26, %s28, %s19
      %p30 = scmp.ge.s32.totalorder %s29, 2
      %s31 = scalar_select %p30, 0, %s29
      %s32 = ssub.s32 %s19, %s31
      %s33 = ssub.s32 %s20, %s27
      %s34 = sor.u32 %s32, %s33
      %p35 = scmp.eq.s32.totalorder %s34, 0
      %s37 = sadd.s32 %s36, 1
      %s38 = scalar_select %p35, %s36, %s37
      %p41 = pneg %p35
      %p42 = scmp.eq.s32.totalorder %s12, 3
      %p43 = por %p41, %p42
      %p44 = scmp.ne.s32.totalorder %s36, %s39
      %p45 = scmp.eq.s32.totalorder %s12, 0
      %p46 = por %p44, %p45
      %p47 = scmp.ne.s32.totalorder %s36, %s39
      %p48 = scmp.eq.s32.totalorder %s17, 3
      %p49 = por %p47, %p48
      %p50 = scmp.ne.s32.totalorder %s39, %s40
      %p51 = scmp.eq.s32.totalorder %s17, 0
      %p52 = por %p50, %p51
      %p53 = scmp.ne.s32.totalorder %s39, %s40
      %p54 = scmp.eq.s32.totalorder %s18, 3
      %p55 = por %p53, %p54
      %p57 = scmp.ne.s32.totalorder %s40, %s56
      %p58 = scmp.eq.s32.totalorder %s18, 0
      %p59 = por %p57, %p58
      %s61 = sadd.s32 %s60, 1
      %p64 = scmp.eq.s32.totalorder %s12, 3
      %p65 = scmp.ne.s32.totalorder %s60, %s62
      %p66 = scmp.eq.s32.totalorder %s12, 0
      %p67 = por %p65, %p66
      %p68 = scmp.ne.s32.totalorder %s60, %s62
      %p69 = scmp.eq.s32.totalorder %s17, 3
      %p70 = por %p68, %p69
      %p71 = scmp.ne.s32.totalorder %s62, %s63
      %p72 = scmp.eq.s32.totalorder %s17, 0
      %p73 = por %p71, %p72
      %p74 = scmp.ne.s32.totalorder %s62, %s63
      %p75 = scmp.eq.s32.totalorder %s18, 3
      %p76 = por %p74, %p75
      %p78 = scmp.ne.s32.totalorder %s63, %s77
      %p79 = scmp.eq.s32.totalorder %s18, 0
      %p80 = por %p78, %p79
      %s82 = sadd.s32 %s81, 1
      %p85 = scmp.eq.s32.totalorder %s12, 3
      %p86 = scmp.ne.s32.totalorder %s81, %s83
      %p87 = scmp.eq.s32.totalorder %s12, 0
      %p88 = por %p86, %p87
      %p89 = scmp.ne.s32.totalorder %s81, %s83
      %p90 = scmp.eq.s32.totalorder %s17, 3
      %p91 = por %p89, %p90
      %p92 = scmp.ne.s32.totalorder %s83, %s84
      %p93 = scmp.eq.s32.totalorder %s17, 0
      %p94 = por %p92, %p93
      %p95 = scmp.ne.s32.totalorder %s83, %s84
      %p96 = scmp.eq.s32.totalorder %s18, 3
      %p97 = por %p95, %p96
      %p99 = scmp.ne.s32.totalorder %s84, %s98
      %p100 = scmp.eq.s32.totalorder %s18, 0
      %p101 = por %p99, %p100
      %s102 = ssub.s32 %s19, %s31
      %p103 = scmp.eq.s32.totalorder %s102, 0
      %s105 = sadd.s32 %s104, 1
      %s106 = scalar_select %p103, %s104, %s105
      %p109 = pneg %p103
      %p110 = scmp.eq.s32.totalorder %s12, 3
      %p111 = por %p109, %p110
      %p112 = scmp.ne.s32.totalorder %s104, %s107
      %p113 = scmp.eq.s32.totalorder %s12, 0
      %p114 = por %p112, %p113
      %p115 = scmp.ne.s32.totalorder %s104, %s107
      %p116 = scmp.eq.s32.totalorder %s17, 3
      %p117 = por %p115, %p116
      %p118 = scmp.ne.s32.totalorder %s107, %s108
      %p119 = scmp.eq.s32.totalorder %s17, 0
      %p120 = por %p118, %p119
      %p121 = scmp.ne.s32.totalorder %s107, %s108
      %p122 = scmp.eq.s32.totalorder %s18, 3
      %p123 = por %p121, %p122
      %p125 = scmp.ne.s32.totalorder %s108, %s124
      %p126 = scmp.eq.s32.totalorder %s18, 0
      %p127 = por %p125, %p126
      %p128 = scmp.le.s32.totalorder 1, %s12
      %p129 = scmp.lt.s32.totalorder %s12, 5
      %p130 = pnand %p128, %p129
      %p131 = pneg %p130
      // Predicated region
      $region9: #{tpu_custom_call.1} parent=5 // pred_check
        _
      $region10: #{tpu_custom_call.1} parent=5 // pred_check_branch
        %133 = sbr.rel (%p130) target = $region12
      $region11: #{tpu_custom_call.1} parent=5 // pred_region
        %s134 = ssub.s32 %s12, 1
        // Predicated region
        $region13: #{tpu_custom_call.1} parent=11 // pred_check
          %p135 = pneg %p73
        $region14: #{tpu_custom_call.1} parent=11 // pred_check_branch
          %137 = sbr.rel (%p135) target = $region16
        $region15: #{tpu_custom_call.1} parent=11 // pred_region
          _
        $region16: #{tpu_custom_call.1} parent=11 // pred_fallthru
          _
        // Predicated region
        $region17: #{tpu_custom_call.1} parent=11 // pred_check
          %p138 = pneg %p94
        $region18: #{tpu_custom_call.1} parent=11 // pred_check_branch
          %140 = sbr.rel (%p138) target = $region20
        $region19: #{tpu_custom_call.1} parent=11 // pred_region
          _
        $region20: #{tpu_custom_call.1} parent=11 // pred_fallthru
          _
      $region12: #{tpu_custom_call.1} parent=5 // pred_fallthru
        _
      %p141 = scmp.lt.s32.totalorder %s12, 4
      // Predicated region
      $region21: #{tpu_custom_call.1} parent=5 // pred_check
        %p142 = pneg %p141
      $region22: #{tpu_custom_call.1} parent=5 // pred_check_branch
        %144 = sbr.rel (%p142) target = $region24
      $region23: #{tpu_custom_call.1} parent=5 // pred_region
        // Predicated region
        $region25: #{tpu_custom_call.1} parent=23 // pred_check
          %p145 = pneg %p46
        $region26: #{tpu_custom_call.1} parent=23 // pred_check_branch
          %147 = sbr.rel (%p145) target = $region28
        $region27: #{tpu_custom_call.1} parent=23 // pred_region
          %s148 = smul.u32 16, %s20
          %p149 = scmp.lt.s32.totalorder %s19, 1
          %s150 = scalar_select %p149, %s19, 1
          %p151 = scmp.lt.s32.totalorder %s148, 31
          %s152 = scalar_select %p151, %s148, 31
          %s153 = smul.addr %s150, 32
          %s154 = sadd.s32 %s152, %s153
          %s155 = smul.addr %s154, 4
          %s156 = scalar_lea.vmem %s0, %s155
          %s157 = smul.u32 16, %s20
        $region28: #{tpu_custom_call.1} parent=23 // pred_fallthru
          _
      $region24: #{tpu_custom_call.1} parent=5 // pred_fallthru
        _
      %p158 = scmp.le.s32.totalorder 1, %s12
      %p159 = scmp.lt.s32.totalorder %s12, 5
      %p160 = pnand %p158, %p159
      %p161 = pneg %p160
      // Predicated region
      $region29: #{tpu_custom_call.1} parent=5 // pred_check
        _
      $region30: #{tpu_custom_call.1} parent=5 // pred_check_branch
        %163 = sbr.rel (%p160) target = $region32
      $region31: #{tpu_custom_call.1} parent=5 // pred_region
        %s164 = ssub.s32 %s12, 1
        %s165 = smul.u32 16, %s22
        %p166 = scmp.lt.s32.totalorder %s21, 1
        %s167 = scalar_select %p166, %s21, 1
        %p168 = scmp.lt.s32.totalorder %s165, 31
        %s169 = scalar_select %p168, %s165, 31
        %s170 = smul.addr %s167, 32
        %s171 = sadd.s32 %s169, %s170
        %s172 = smul.addr %s171, 4
        %s173 = scalar_lea.vmem %s0, %s172
        %p174 = pneg %p52
        %p175 = pneg %p49
        %p176 = pneg %p73
        %p177 = pneg %p70
        %p178 = pneg %p94
        %p179 = pneg %p91
        %p180 = pneg %p120
        %p181 = pneg %p117
        %s182 = sand.u32 %s107, 1
        %s183 = scalar_lea.sflag [#allocation4], %s182
        %s184 = sand.u32 %s107, 1
        %s185 = scalar_lea.vmem [#allocation3], %s184
        %s186 = smul.u32 16, %s22
        %p187 = scmp.lt.s32.totalorder %s21, 1
        %s188 = scalar_select %p187, %s21, 1
        %p189 = scmp.lt.s32.totalorder %s186, 31
        %s190 = scalar_select %p189, %s186, 31
        %s191 = smul.addr %s188, 32
        %s192 = sadd.s32 %s190, %s191
        %s193 = smul.addr %s192, 4
        %s194 = scalar_lea.vmem %s0, %s193
        %s195 = smul.u32 16, %s22
        %p196 = scmp.eq.s32.totalorder %s22, 0
        // Predicated region
        $region33: #{tpu_custom_call.1} parent=31 // pred_check
          %p197 = pneg %p196
        $region34: #{tpu_custom_call.1} parent=31 // pred_check_branch
          %199 = sbr.rel (%p197) target = $region36
        $region35: #{tpu_custom_call.1} parent=31 // pred_region
          %vm200 = vcmask 24576
          %201 = vst.msk [vmem:[#allocation2] sm:$0x1] %vm200, 0.0
        $region36: #{tpu_custom_call.1} parent=31 // pred_fallthru
          _
        %v202 = vld [vmem:[#allocation2] sm:$0x1]
        %v203 = vld [vmem:[%s194] sm:$0xf]
        %v204 = vld [vmem:[%s194 + $0x4] sm:$0xf]
        %v205 = vld [vmem:[%s194 + $0x8] sm:$0xf]
        %v206 = vld [vmem:[%s194 + $0xc] sm:$0xf]
        %v207 = vld [vmem:[%s194 + $0x10] sm:$0xf]
        %v208 = vld [vmem:[%s194 + $0x14] sm:$0xf]
        %v209 = vld [vmem:[%s194 + $0x18] sm:$0xf]
        %v210 = vld [vmem:[%s194 + $0x1c] sm:$0xf]
        %v211 = vld [vmem:[%s194 + $0x20] sm:$0xf]
        %v212 = vld [vmem:[%s194 + $0x24] sm:$0xf]
        %v213 = vld [vmem:[%s194 + $0x28] sm:$0xf]
        %v214 = vld [vmem:[%s194 + $0x2c] sm:$0xf]
        %v215 = vld [vmem:[%s194 + $0x30] sm:$0xf]
        %v216 = vld [vmem:[%s194 + $0x34] sm:$0xf]
        %v217 = vld [vmem:[%s194 + $0x38] sm:$0xf]
        %v218 = vld [vmem:[%s194 + $0x3c] sm:$0xf]
        %v219 = vunpack.c.l.bf16 %v203
        %v220 = vunpack.c.l.bf16 %v204
        %v221 = vunpack.c.l.bf16 %v205
        %v222 = vunpack.c.l.bf16 %v206
        %v223 = vunpack.c.l.bf16 %v207
        %v224 = vunpack.c.l.bf16 %v208
        %v225 = vunpack.c.l.bf16 %v209
        %v226 = vunpack.c.l.bf16 %v210
        %v227 = vunpack.c.l.bf16 %v211
        %v228 = vunpack.c.l.bf16 %v212
        %v229 = vunpack.c.l.bf16 %v213
        %v230 = vunpack.c.l.bf16 %v214
        %v231 = vunpack.c.l.bf16 %v215
        %v232 = vunpack.c.l.bf16 %v216
        %v233 = vunpack.c.l.bf16 %v217
        %v234 = vunpack.c.l.bf16 %v218
        %vm235 = vcmask 31744
        %v236 = vsel %vm235, %v219, 0.0
        %v237 = vsel %vm235, %v220, 0.0
        %v238 = vadd.f32 %v236, %v237
        %v239 = vsel %vm235, %v221, 0.0
        %v240 = vadd.f32 %v238, %v239
        %v241 = vsel %vm235, %v222, 0.0
        %v242 = vadd.f32 %v240, %v241
        %v243 = vsel %vm235, %v223, 0.0
        %v244 = vadd.f32 %v242, %v243
        %v245 = vsel %vm235, %v224, 0.0
        %v246 = vadd.f32 %v244, %v245
        %v247 = vsel %vm235, %v225, 0.0
        %v248 = vadd.f32 %v246, %v247
        %v249 = vsel %vm235, %v226, 0.0
        %v250 = vadd.f32 %v248, %v249
        %v251 = vsel %vm235, %v227, 0.0
        %v252 = vadd.f32 %v250, %v251
        %v253 = vsel %vm235, %v228, 0.0
        %v254 = vadd.f32 %v252, %v253
        %v255 = vsel %vm235, %v229, 0.0
        %v256 = vadd.f32 %v254, %v255
        %v257 = vsel %vm235, %v230, 0.0
        %v258 = vadd.f32 %v256, %v257
        %v259 = vsel %vm235, %v231, 0.0
        %v260 = vadd.f32 %v258, %v259
        %v261 = vsel %vm235, %v232, 0.0
        %v262 = vadd.f32 %v260, %v261
        %v263 = vsel %vm235, %v233, 0.0
        %v264 = vadd.f32 %v262, %v263
        %v265 = vsel %vm235, %v234, 0.0
        %v266 = vadd.f32 %v264, %v265
        %v267 = vrot.slane %v266, 4
        %v268 = vadd.f32 %v266, %v267
        %v269 = vrot.slane %v268, 2
        %v270 = vadd.f32 %v268, %v269
        %v271 = vrot.slane %v270, 1
        %v272 = vadd.f32 %v270, %v271
        %v273 = vadd.f32 %v202, %v272
        %vm274 = vcmask 24576
        %275 = vst.msk [vmem:[#allocation2] sm:$0x1] %vm274, %v273
        %p276 = scmp.eq.s32.totalorder %s22, 1
        // Predicated region
        $region37: #{tpu_custom_call.1} parent=31 // pred_check
          %p277 = pneg %p276
        $region38: #{tpu_custom_call.1} parent=31 // pred_check_branch
          %279 = sbr.rel (%p277) target = $region40
        $region39: #{tpu_custom_call.1} parent=31 // pred_region
          %v280 = vld [vmem:[#allocation2] sm:$0x1]
          %v281 = vmul.f32 %v280, 0.00390625
          %v282 = vld [vmem:[%s1] sm:$0xf]
          %v283 = vld [vmem:[%s2] sm:$0x1]
          %v285 = vsel %vm235, %v281, 0
          %vm287 = vcmask 1043456
          %v289 = vsel %vm287, %v282, 0
          %291 = vmatprep.subr.mxu0 0.0
          %292 = vmatpush1.msra.mxu0 %v289
          %293 = vmatprep.subr.mxu0 0.0
          %294 = vmatpush1.msra.mxu0 0.0
          %295 = vmatprep.subr.mxu0 0.0
          %296 = vmatpush1.msra.mxu0 0.0
          %297 = vmatprep.subr.mxu0 0.0
          %298 = vmatpush1.msra.mxu0 0.0
          %299 = vmatprep.subr.mxu0 0.0
          %300 = vmatpush1.msra.mxu0 0.0
          %301 = vmatprep.subr.mxu0 0.0
          %302 = vmatpush1.msra.mxu0 0.0
          %303 = vmatprep.subr.mxu0 0.0
          %304 = vmatpush1.msra.mxu0 0.0
          %305 = vmatprep.subr.mxu0 0.0
          %306 = vmatpush1.msra.mxu0 0.0
          %307 = vmatprep.subr.mxu0 0.0
          %308 = vmatpush1.msra.mxu0 0.0
          %309 = vmatprep.subr.mxu0 0.0
          %310 = vmatpush1.msra.mxu0 0.0
          %311 = vmatprep.subr.mxu0 0.0
          %312 = vmatpush1.msra.mxu0 0.0
          %313 = vmatprep.subr.mxu0 0.0
          %314 = vmatpush1.msra.mxu0 0.0
          %315 = vmatprep.subr.mxu0 0.0
          %316 = vmatpush1.msra.mxu0 0.0
          %317 = vmatprep.subr.mxu0 0.0
          %318 = vmatpush1.msra.mxu0 0.0
          %319 = vmatprep.subr.mxu0 0.0
          %320 = vmatpush1.msra.mxu0 0.0
          %321 = vmatprep.subr.mxu0 0.0
          %322 = vmatpush1.msra.mxu0 0.0
          %323 = vmatprep.subr.mxu0 0.0
          %324 = vmatpush1.msra.mxu0 0.0
          %325 = vmatprep.subr.mxu0 0.0
          %326 = vmatpush1.msra.mxu0 0.0
          %327 = vmatprep.subr.mxu0 0.0
          %328 = vmatpush1.msra.mxu0 0.0
          %329 = vmatprep.subr.mxu0 0.0
          %330 = vmatpush1.msra.mxu0 0.0
          %331 = vmatprep.subr.mxu0 0.0
          %332 = vmatpush1.msra.mxu0 0.0
          %333 = vmatprep.subr.mxu0 0.0
          %334 = vmatpush1.msra.mxu0 0.0
          %335 = vmatprep.subr.mxu0 0.0
          %336 = vmatpush1.msra.mxu0 0.0
          %337 = vmatprep.subr.mxu0 0.0
          %338 = vmatpush1.msra.mxu0 0.0
          %339 = vmatprep.subr.mxu0 0.0
          %340 = vmatpush1.msra.mxu0 0.0
          %341 = vmatprep.subr.mxu0 0.0
          %342 = vmatpush1.msra.mxu0 0.0
          %343 = vmatprep.subr.mxu0 0.0
          %344 = vmatpush1.msra.mxu0 0.0
          %345 = vmatprep.subr.mxu0 0.0
          %346 = vmatpush1.msra.mxu0 0.0
          %347 = vmatprep.subr.mxu0 0.0
          %348 = vmatpush1.msra.mxu0 0.0
          %349 = vmatprep.subr.mxu0 0.0
          %350 = vmatpush1.msra.mxu0 0.0
          %351 = vmatprep.subr.mxu0 0.0
          %352 = vmatpush1.msra.mxu0 0.0
          %353 = vmatprep.subr.mxu0 0.0
          %354 = vmatpush1.msra.mxu0 0.0
          %355 = vmatprep.mubr.f32.mxu0 0.0
          %356 = vmatmul.mubr.f32.gmra.mrb[0].mxu0 %v285
          %v357 = vpop.f32.mrb[0].mxu0
          %v358 = vadd.f32 %v283, %v357
          %v359 = vpop.f32.mrb[0].mxu0
          %360 = vdwg.mxu0
          %v361 = vmax.f32 %v358, 0.0
          %vm362 = vcmask 57344
          %363 = vst.msk [vmem:[%s185] sm:$0x1] %vm362, %v361
        $region40: #{tpu_custom_call.1} parent=31 // pred_fallthru
          _
        %s364 = sand.u32 %s107, 1
        %s365 = scalar_lea.sflag [#allocation4], %s364
        %s366 = sand.u32 %s107, 1
        %s367 = scalar_lea.vmem [#allocation3], %s366
        // Predicated region
        $region41: #{tpu_custom_call.1} parent=31 // pred_check
          %p368 = pneg %p117
        $region42: #{tpu_custom_call.1} parent=31 // pred_check_branch
          %370 = sbr.rel (%p368) target = $region44
        $region43: #{tpu_custom_call.1} parent=31 // pred_region
          %s372 = ssub.s32 16, 16
          %373 = vsyncadd %s365, %s372
          %s374 = smul.addr %s21, 16
          %s375 = scalar_lea.hbm %s3, %s374
          %s377 = sshll.u32 %s367, 4
          %s378 = int_to_ptr.vmem [resolvable:$true] %s377
          %380 = dma.vmem_to_hbm [thread:$0]  %s378, 16, %s375, %s365
        $region44: #{tpu_custom_call.1} parent=31 // pred_fallthru
          _
      $region32: #{tpu_custom_call.1} parent=5 // pred_fallthru
        _
      %p381 = scmp.le.s32.totalorder 2, %s12
      // Predicated region
      $region45: #{tpu_custom_call.1} parent=5 // pred_check
        %p382 = pneg %p381
      $region46: #{tpu_custom_call.1} parent=5 // pred_check_branch
        %384 = sbr.rel (%p382) target = $region48
      $region47: #{tpu_custom_call.1} parent=5 // pred_region
        %s385 = ssub.s32 %s12, 2
        // Predicated region
        $region49: #{tpu_custom_call.1} parent=47 // pred_check
          %p386 = pneg %p123
        $region50: #{tpu_custom_call.1} parent=47 // pred_check_branch
          %388 = sbr.rel (%p386) target = $region52
        $region51: #{tpu_custom_call.1} parent=47 // pred_region
          %s389 = sand.u32 %s108, 1
          %s390 = scalar_lea.sflag [#allocation4], %s389
          %s391 = sand.u32 %s108, 1
          %s392 = scalar_lea.vmem [#allocation3], %s391
          %393 = dma.done %s390, 16
        $region52: #{tpu_custom_call.1} parent=47 // pred_fallthru
          _
      $region48: #{tpu_custom_call.1} parent=5 // pred_fallthru
        _
    $region6: #{tpu_custom_call.1} parent=1 // loop_footer
      %s16 = sadd.s32 1, %s12
    $region7: #{tpu_custom_call.1} parent=1 // loop_footer_branch
      %11 = sbr.rel target = $region3
    $region8: #{tpu_custom_call.1} parent=1 // loop_exit
      _
    %394 = vsyncpa [#allocation4], 1
    %s395 = scalar_lea.sflag [#allocation4], 1
    %396 = vsyncpa %s395, 1

</llo_original>
